<compile_context>
chip_gen: v7x
topology: tpu7x:2x2x1
jax: 0.10.0
libtpu: 0.0.40
codegen_flags: <defaults>
</compile_context>

<pallas_src>
import functools

import jax
import jax.numpy as jnp
from jax.experimental import pallas as pl
from jax.experimental.pallas import tpu as pltpu

BN_EPS = 1e-5
MAX_TILE_M = 8192          # upper bound on rows per grid step (8-aligned)


def _round_up(x, m):
    return (x + m - 1) // m * m


def _pick_vmem_limit():
    """Generation-aware scoped-VMEM budget (leave headroom for temporaries)."""
    try:
        cap = int(pltpu.get_tpu_info().vmem_capacity_bytes)
    except Exception:
        cap = 64 * 1024 * 1024          # conservative (v7x-sized) fallback
    return int(min(cap * 3 // 4, 96 * 1024 * 1024))


_VMEM_LIMIT = _pick_vmem_limit()


def _pick_tiling(m, max_tile_m):
    """Choose (tile_m, m_pad, n_tiles) with 8-aligned tiles and minimal padding."""
    assert max_tile_m % 8 == 0
    m8 = _round_up(max(m, 1), 8)
    n_tiles = -(-m8 // max_tile_m)
    tile_m = _round_up(-(-m8 // n_tiles), 8)
    m_pad = tile_m * n_tiles
    # The last tile must contain at least one real row (pad-row handling).
    assert m > (n_tiles - 1) * tile_m, "tiling produced an all-padding tile"
    return tile_m, m_pad, n_tiles


# ---------------------------------------------------------------------------
# Kernels
# ---------------------------------------------------------------------------
def _hidden_kernel(x_ref, w_ref, vec_ref, o_ref,
                   sum_ref, sq_ref, shift_ref, pad_ref, *,
                   m_rows, tile_m, n_tiles, n_pad, x_resident, fuse_final):
    """Two-phase Linear + BN(train) + ReLU [+ fused Linear->1].

    grid = (2, n_tiles): phase 0 accumulates shifted per-feature sum / sumsq,
    phase 1 recomputes the matmul and applies the folded BN scale/offset.
    vec_ref rows: 0 = gamma, 1 = beta, 2 = final weight row, 3 = final bias
    (broadcast); rows 2/3 are zero for non-final layers.
    """
    p = pl.program_id(0)        # 0 = stats pass, 1 = apply pass
    t = pl.program_id(1)        # row tile

    if x_resident:
        # x is one constant-index VMEM-resident block: slice the tile here,
        # so x is DMA'd from HBM once instead of once per phase per tile.
        r0 = pl.multiple_of(t * tile_m, tile_m)
        x = x_ref[pl.ds(r0, tile_m), :]
    else:
        x = x_ref[...]

    # Hidden Linear WITHOUT bias: the bias is exactly cancelled by the
    # following training-mode BatchNorm (h - mean(h)), so it is dropped.
    h = jnp.dot(x, w_ref[...], preferred_element_type=jnp.float32)

    # ---- phase 0: shifted (centered) per-feature statistics ---------------
    @pl.when((p == 0) & (t == 0))
    def _():
        # Per-feature shift = first tile's mean: keeps the accumulated sums
        # small so E[h^2]-E[h]^2 does not cancel catastrophically.
        shift_ref[...] = jnp.mean(h, axis=0, keepdims=True)
        sum_ref[...] = jnp.zeros_like(sum_ref)
        sq_ref[...] = jnp.zeros_like(sq_ref)

    @pl.when(p == 0)
    def _():
        hc = h - shift_ref[...]
        sum_ref[...] += jnp.sum(hc, axis=0, keepdims=True)
        sq_ref[...] += jnp.sum(hc * hc, axis=0, keepdims=True)

    if n_pad:
        # All padded rows of x are identical (zeros for the first layer, a
        # constant ReLU(offset) row for deeper layers), so their exact stats
        # contribution can be removed analytically -- no per-row mask needed.
        pad_local = m_rows - (n_tiles - 1) * tile_m   # first padded row in tile

        @pl.when((p == 0) & (t == n_tiles - 1))
        def _():
            pad_ref[...] = h[pad_local:pad_local + 1, :]

    # ---- phase 1 @ first tile: fold BN into one scale/offset pair ---------
    @pl.when((p == 1) & (t == 0))
    def _():
        s = shift_ref[...]
        sum_c = sum_ref[...]
        sq_c = sq_ref[...]
        if n_pad:
            d = pad_ref[...] - s
            sum_c = sum_c - float(n_pad) * d
            sq_c = sq_c - float(n_pad) * (d * d)
        inv_m = 1.0 / float(m_rows)
        mean_c = sum_c * inv_m
        var = jnp.maximum(sq_c * inv_m - mean_c * mean_c, 0.0)
        mean = s + mean_c
        scale = vec_ref[0:1, :] * jax.lax.rsqrt(var + BN_EPS)   # gamma/std
        offset = vec_ref[1:2, :] - mean * scale                 # beta - mean*scale
        sum_ref[...] = scale       # cache: reuse stats scratch for scale
        sq_ref[...] = offset       # cache: ... and offset

    # ---- phase 1: normalize + ReLU (+ fused final Linear) -----------------
    @pl.when(p == 1)
    def _():
        y = jnp.maximum(h * sum_ref[...] + sq_ref[...], 0.0)
        if fuse_final:
            # Final Linear(inter -> 1): VPU multiply + lane reduction, no
            # extra pallas_call / HBM round trip of the (M, inter) activation.
            o_ref[...] = (jnp.sum(y * vec_ref[2:3, :], axis=-1, keepdims=True)
                          + vec_ref[3:4, 0:1]).astype(o_ref.dtype)
        else:
            o_ref[...] = y.astype(o_ref.dtype)


def _final_only_kernel(x_ref, wf_ref, bf_ref, o_ref):
    """layer_num == 1 path: plain Linear(in_num -> 1) over row tiles."""
    x = x_ref[...].astype(jnp.float32)
    o_ref[...] = (jnp.sum(x * wf_ref[...], axis=-1, keepdims=True)
                  + bf_ref[...]).astype(o_ref.dtype)


# ---------------------------------------------------------------------------
# pallas_call wrappers
# ---------------------------------------------------------------------------
def _call_hidden_block(x2, w_t, vecs, *, tile_m, m_rows, fuse_final,
                       x_resident, vmem_limit):
    m_pad, f_in = x2.shape
    f_out = w_t.shape[1]
    n_tiles = m_pad // tile_m
    n_pad = m_pad - m_rows

    kernel = functools.partial(
        _hidden_kernel, m_rows=m_rows, tile_m=tile_m, n_tiles=n_tiles,
        n_pad=n_pad, x_resident=x_resident, fuse_final=fuse_final)

    const = lambda p, t: (0, 0)                      # resident blocks
    if x_resident:
        x_spec = pl.BlockSpec((m_pad, f_in), const)              # fetched once
    else:
        x_spec = pl.BlockSpec((tile_m, f_in), lambda p, t: (t, 0))

    in_specs = [
        x_spec,
        pl.BlockSpec((f_in, f_out), const),          # W (in, out) bf16, resident
        pl.BlockSpec((4, f_out), const),             # gamma/beta/wf/bf, resident
    ]

    if fuse_final:
        out_w, out_dtype = 1, jnp.float32
    else:
        out_w, out_dtype = f_out, jnp.bfloat16

    # Output map: every phase-0 step maps to block 0, which is only written
    # back after step (1, 0) has filled it with real data; each block then
    # reaches HBM exactly once with phase-1 contents.  Valid only under the
    # strictly sequential ("arbitrary", "arbitrary") grid used below.
    out_spec = pl.BlockSpec((tile_m, out_w), lambda p, t: (p * t, 0))

    x_reads = 1 if x_resident else 2                 # phases share or re-read x
    flops = 2 * (2 * m_pad * f_in * f_out)           # matmul runs in both phases
    bytes_accessed = (x_reads * x2.size * x2.dtype.itemsize
                      + w_t.size * w_t.dtype.itemsize + vecs.size * 4
                      + m_pad * out_w * jnp.dtype(out_dtype).itemsize)

    return pl.pallas_call(
        kernel,
        out_shape=jax.ShapeDtypeStruct((m_pad, out_w), out_dtype),
        grid_spec=pltpu.PrefetchScalarGridSpec(
            num_scalar_prefetch=0,
            grid=(2, n_tiles),
            in_specs=in_specs,
            out_specs=out_spec,
            scratch_shapes=[pltpu.VMEM((1, f_out), jnp.float32),   # sum  / scale
                            pltpu.VMEM((1, f_out), jnp.float32),   # sqsum/ offset
                            pltpu.VMEM((1, f_out), jnp.float32),   # shift
                            pltpu.VMEM((1, f_out), jnp.float32)]), # pad-row h
        compiler_params=pltpu.CompilerParams(
            # Row-tile axis must be sequential: phase 1 consumes statistics
            # reduced over ALL tiles via shared VMEM scratch.
            dimension_semantics=("arbitrary", "arbitrary"),
            vmem_limit_bytes=vmem_limit),
        cost_estimate=pl.CostEstimate(flops=int(flops),
                                      transcendentals=int(f_out),
                                      bytes_accessed=int(bytes_accessed)),
    )(x2, w_t, vecs)


def _call_final_only(x2, wf, bf, *, tile_m, vmem_limit):
    m_pad, f_in = x2.shape
    n_tiles = m_pad // tile_m
    return pl.pallas_call(
        _final_only_kernel,
        out_shape=jax.ShapeDtypeStruct((m_pad, 1), jnp.float32),
        grid_spec=pltpu.PrefetchScalarGridSpec(
            num_scalar_prefetch=0,
            grid=(n_tiles,),
            in_specs=[pl.BlockSpec((tile_m, f_in), lambda t: (t, 0)),
                      pl.BlockSpec((1, f_in), lambda t: (0, 0)),
                      pl.BlockSpec((1, 1), lambda t: (0, 0))],
            out_specs=pl.BlockSpec((tile_m, 1), lambda t: (t, 0))),
        compiler_params=pltpu.CompilerParams(
            dimension_semantics=("parallel",),
            vmem_limit_bytes=vmem_limit),
    )(x2, wf, bf)


# ---------------------------------------------------------------------------
# Parameters (pre-transposed / pre-cast / pre-packed ONCE at init)
# ---------------------------------------------------------------------------
def init_out_layer_params(key, in_num, layer_num, inter_num):
    raw = []
    for i in range(layer_num - 1):
        layer_in = in_num if i == 0 else inter_num
        key, kw, kb, kg, kbe = jax.random.split(key, 5)
        w = jax.random.normal(kw, (inter_num, layer_in), jnp.float32) * 0.05
        b = jax.random.normal(kb, (inter_num,), jnp.float32) * 0.05
        gamma = 1.0 + 0.1 * jax.random.normal(kg, (1, inter_num), jnp.float32)
        beta = 0.1 * jax.random.normal(kbe, (1, inter_num), jnp.float32)
        raw.append((w, b, gamma, beta))

    final_in = in_num if layer_num == 1 else inter_num
    key, kw, kb = jax.random.split(key, 3)
    wf = jax.random.normal(kw, (1, final_in), jnp.float32) * 0.05
    bf = jax.random.normal(kb, (1, 1), jnp.float32) * 0.05

    hidden, hidden_ref = [], []
    for i, (w, b, gamma, beta) in enumerate(raw):
        if i == len(raw) - 1:        # last hidden block absorbs the final Linear
            row_wf = wf
            row_bf = jnp.full((1, inter_num), bf[0, 0], jnp.float32)
        else:
            row_wf = jnp.zeros((1, inter_num), jnp.float32)
            row_bf = jnp.zeros((1, inter_num), jnp.float32)
        vecs = jnp.concatenate([gamma, beta, row_wf, row_bf], axis=0)  # (4, inter)
        hidden.append({"w_t": jnp.asarray(w.T, jnp.bfloat16),   # (in,out), MXU-ready
                       "vecs": vecs})
        # Note: the hidden Linear bias `b` exists in the module but is exactly
        # cancelled by training-mode BN; kept only for the f32 reference.
        hidden_ref.append({"w": w, "b": b, "gamma": gamma, "beta": beta})

    params = {"hidden": hidden, "final_w": wf, "final_b": bf}
    ref_params = {"hidden": hidden_ref, "final_w": wf, "final_b": bf}
    return params, ref_params


# ---------------------------------------------------------------------------
# Forward pass
# ---------------------------------------------------------------------------
@functools.partial(jax.jit, static_argnames=("max_tile_m", "allow_resident"))
def out_layer_forward(params, x, max_tile_m=MAX_TILE_M, allow_resident=True):
    # x: (B, N, in_num) -> (B, N, 1); BatchNorm over the flattened (B*N) rows.
    b_dim, n_dim, f_in = x.shape
    m = b_dim * n_dim
    tile_m, m_pad, _ = _pick_tiling(m, max_tile_m)

    cur = x.reshape(m, f_in).astype(jnp.bfloat16)
    if m_pad != m:
        cur = jnp.pad(cur, ((0, m_pad - m), (0, 0)))

    hidden = params["hidden"]
    if not hidden:
        out = _call_final_only(cur, params["final_w"], params["final_b"],
                               tile_m=tile_m, vmem_limit=_VMEM_LIMIT)
    else:
        for i, layer in enumerate(hidden):
            x_bytes = cur.size * cur.dtype.itemsize
            # Pin x VMEM-resident across both phases when it comfortably fits
            # (leaves room for double buffers + compiler temporaries).
            x_resident = allow_resident and (x_bytes * 5 <= _VMEM_LIMIT)
            cur = _call_hidden_block(
                cur, layer["w_t"], layer["vecs"],
                tile_m=tile_m, m_rows=m,
                fuse_final=(i == len(hidden) - 1),
                x_resident=x_resident, vmem_limit=_VMEM_LIMIT)
        out = cur
    return out[:m].reshape(b_dim, n_dim, 1)


# ---------------------------------------------------------------------------
# Pure-JAX references
# ---------------------------------------------------------------------------
def _reference_forward_f32(ref_params, x):
    """Full-f32 reference matching the PyTorch module (training-mode BN)."""
    b_dim, n_dim, _ = x.shape
    out = x.reshape(b_dim * n_dim, -1).astype(jnp.float32)
    for layer in ref_params["hidden"]:
        h = out @ layer["w"].T + layer["b"]
        mean = h.mean(axis=0, keepdims=True)
        var = ((h - mean) ** 2).mean(axis=0, keepdims=True)
        h = (h - mean) / jnp.sqrt(var + BN_EPS) * layer["gamma"] + layer["beta"]
        out = jnp.maximum(h, 0.0)
    out = out @ ref_params["final_w"].T + ref_params["final_b"]
    return out.reshape(b_dim, n_dim, 1)


def _reference_forward_kernel_numerics(params, x):
    """Reference mirroring the kernel's compute dtypes (bf16 MXU, f32 BN)."""
    b_dim, n_dim, _ = x.shape
    m = b_dim * n_dim
    cur = x.reshape(m, -1).astype(jnp.bfloat16)
    hidden = params["hidden"]
    if not hidden:
        out = (jnp.sum(cur.astype(jnp.float32) * params["final_w"],
                       axis=-1, keepdims=True) + params["final_b"])
        return out.reshape(b_dim, n_dim, 1)
    out = None
    for i, layer in enumerate(hidden):
        h = jnp.dot(cur, layer["w_t"], preferred_element_type=jnp.float32)
        mean = jnp.mean(h, axis=0, keepdims=True)
        var = jnp.mean((h - mean) ** 2, axis=0, keepdims=True)
        scale = layer["vecs"][0:1] * jax.lax.rsqrt(var + BN_EPS)
        offset = layer["vecs"][1:2] - mean * scale
        y = jnp.maximum(h * scale + offset, 0.0)
        if i == len(hidden) - 1:
            out = (jnp.sum(y * layer["vecs"][2:3], axis=-1, keepdims=True)
                   + layer["vecs"][3:4, 0:1])
        else:
            cur = y.astype(jnp.bfloat16)
    return out.reshape(b_dim, n_dim, 1)


def _check(name, params, ref_params, x, max_tile_m=MAX_TILE_M,
           allow_resident=True):
    y = out_layer_forward(params, x, max_tile_m=max_tile_m,
                          allow_resident=allow_resident)
    jax.block_until_ready(y)
    assert y.shape == (x.shape[0], x.shape[1], 1), name

    y_kn = _reference_forward_kernel_numerics(params, x)
    assert jnp.allclose(y, y_kn, atol=5e-3, rtol=5e-3), (
        f"{name}: mismatch vs kernel-numerics reference")

    y_f32 = _reference_forward_f32(ref_params, x)
    rel = float(jnp.linalg.norm(y - y_f32) / (jnp.linalg.norm(y_f32) + 1e-12))
    assert rel < 0.1, f"{name}: bf16 drift vs f32 reference too large ({rel})"


if __name__ == "__main__":
    IN_NUM = 32        # input features
    INTER_NUM = 128    # intermediate width (lane-aligned)

    key = jax.random.PRNGKey(0)
    key, kx1, kx2, kp1, kp2, kp3 = jax.random.split(key, 6)

    x1 = jax.random.normal(kx1, (2, 8, IN_NUM), jnp.float32)   # M = 16
    x2 = jax.random.normal(kx2, (3, 7, IN_NUM), jnp.float32)   # M = 21 (padding)

    # layer_num = 2: single-tile resident / multi-tile padded / streamed paths.
    params2, ref2 = init_out_layer_params(kp2, IN_NUM, 2, INTER_NUM)
    _check("layer_num=2 single-tile resident", params2, ref2, x1)
    _check("layer_num=2 multi-tile padded resident", params2, ref2, x2,
           max_tile_m=8)
    _check("layer_num=2 multi-tile padded streamed", params2, ref2, x2,
           max_tile_m=8, allow_resident=False)

    # layer_num = 3: exercises the non-final hidden block and the analytic
    # removal of the (non-zero) padded rows for the second layer's statistics.
    params3, ref3 = init_out_layer_params(kp3, IN_NUM, 3, INTER_NUM)
    _check("layer_num=3 multi-tile padded resident", params3, ref3, x2,
           max_tile_m=8)
    _check("layer_num=3 multi-tile padded streamed", params3, ref3, x2,
           max_tile_m=8, allow_resident=False)

    # layer_num = 1: final-only linear kernel.
    params1, ref1 = init_out_layer_params(kp1, IN_NUM, 1, INTER_NUM)
    _check("layer_num=1 final-only", params1, ref1, x1)

    print("KERNEL_OK")
</pallas_src>

<mosaic_0001>
module attributes {stable_mosaic.version = 11 : i64} {
  func.func @_hidden_kernel(%arg0: i32, %arg1: i32, %arg2: memref<16x32xbf16, #tpu.memory_space<vmem>>, %arg3: memref<32x128xbf16, #tpu.memory_space<vmem>>, %arg4: memref<4x128xf32, #tpu.memory_space<vmem>>, %arg5: memref<16x1xf32, #tpu.memory_space<vmem>>, %arg6: memref<1x128xf32, #tpu.memory_space<vmem>>, %arg7: memref<1x128xf32, #tpu.memory_space<vmem>>, %arg8: memref<1x128xf32, #tpu.memory_space<vmem>>, %arg9: memref<1x128xf32, #tpu.memory_space<vmem>>) attributes {dimension_semantics = [#tpu.dimension_semantics<arbitrary>, #tpu.dimension_semantics<arbitrary>], iteration_bounds = array<i64: 2, 1>, scalar_prefetch = 0 : i64, scratch_operands = 4 : i64, tpu.core_type = #tpu.core_type<tc>, window_params = [{pipeline_mode = #tpu.pipeline_mode<synchronous>, transform_indices = @transform_0, window_bounds = array<i64: 16, 32>}, {pipeline_mode = #tpu.pipeline_mode<synchronous>, transform_indices = @transform_1, window_bounds = array<i64: 32, 128>}, {pipeline_mode = #tpu.pipeline_mode<synchronous>, transform_indices = @transform_2, window_bounds = array<i64: 4, 128>}, {transform_indices = @transform_3, window_bounds = array<i64: 16, 1>}]} {
    %c16_i32 = arith.constant 16 : i32
    %0 = arith.muli %arg1, %c16_i32 : i32
    %1 = tpu.assume_multiple %0, 16 : i32
    %2 = arith.index_cast %1 : i32 to index
    %c0 = arith.constant 0 : index
    %3 = vector.load %arg2[%2, %c0] : memref<16x32xbf16, #tpu.memory_space<vmem>>, vector<16x32xbf16>
    %c0_0 = arith.constant 0 : index
    %c0_1 = arith.constant 0 : index
    %4 = vector.load %arg3[%c0_0, %c0_1] : memref<32x128xbf16, #tpu.memory_space<vmem>>, vector<32x128xbf16>
    %cst = arith.constant dense<0.000000e+00> : vector<16x128xf32>
    %5 = tpu.matmul %3, %4, %cst {dimension_numbers = #tpu.dot_dimension_numbers<[1], [0], [0], [1], [0, 0, 1, 1], [], []>} : vector<16x32xbf16>, vector<32x128xbf16>, vector<16x128xf32> -> vector<16x128xf32>
    %c0_i32 = arith.constant 0 : i32
    %6 = arith.cmpi eq, %arg0, %c0_i32 : i32
    %c0_i32_2 = arith.constant 0 : i32
    %7 = arith.cmpi eq, %arg1, %c0_i32_2 : i32
    %8 = arith.andi %6, %7 : i1
    %9 = arith.extui %8 : i1 to i32
    %c0_i32_3 = arith.constant 0 : i32
    %10 = arith.cmpi ne, %9, %c0_i32_3 : i32
    scf.if %10 {
      %cst_10 = arith.constant dense<0.000000e+00> : vector<128xf32>
      %22 = vector.multi_reduction <add>, %5, %cst_10 [0] : vector<16x128xf32> to vector<128xf32>
      %23 = vector.shape_cast %22 : vector<128xf32> to vector<1x128xf32>
      %cst_11 = arith.constant 1.600000e+01 : f32
      %24 = vector.broadcast %cst_11 : f32 to vector<1x128xf32>
      %25 = arith.divf %23, %24 : vector<1x128xf32>
      %c0_12 = arith.constant 0 : index
      %c0_13 = arith.constant 0 : index
      %26 = vector.load %arg8[%c0_12, %c0_13] : memref<1x128xf32, #tpu.memory_space<vmem>>, vector<1x128xf32>
      tpu.vector_store %arg8[%c0_12, %c0_13], %25 {strides = array<i32>} : memref<1x128xf32, #tpu.memory_space<vmem>>, vector<1x128xf32>,
      %cst_14 = arith.constant 0.000000e+00 : f32
      %27 = vector.broadcast %cst_14 : f32 to vector<1x128xf32>
      %c0_15 = arith.constant 0 : index
      %c0_16 = arith.constant 0 : index
      %28 = vector.load %arg6[%c0_15, %c0_16] : memref<1x128xf32, #tpu.memory_space<vmem>>, vector<1x128xf32>
      tpu.vector_store %arg6[%c0_15, %c0_16], %27 {strides = array<i32>} : memref<1x128xf32, #tpu.memory_space<vmem>>, vector<1x128xf32>,
      %cst_17 = arith.constant 0.000000e+00 : f32
      %29 = vector.broadcast %cst_17 : f32 to vector<1x128xf32>
      %c0_18 = arith.constant 0 : index
      %c0_19 = arith.constant 0 : index
      %30 = vector.load %arg7[%c0_18, %c0_19] : memref<1x128xf32, #tpu.memory_space<vmem>>, vector<1x128xf32>
      tpu.vector_store %arg7[%c0_18, %c0_19], %29 {strides = array<i32>} : memref<1x128xf32, #tpu.memory_space<vmem>>, vector<1x128xf32>,
    } else {
    }
    %c0_i32_4 = arith.constant 0 : i32
    %11 = arith.cmpi eq, %arg0, %c0_i32_4 : i32
    %12 = arith.extui %11 : i1 to i32
    %c0_i32_5 = arith.constant 0 : i32
    %13 = arith.cmpi ne, %12, %c0_i32_5 : i32
    scf.if %13 {
      %c0_10 = arith.constant 0 : index
      %c0_11 = arith.constant 0 : index
      %22 = vector.load %arg8[%c0_10, %c0_11] : memref<1x128xf32, #tpu.memory_space<vmem>>, vector<1x128xf32>
      %23 = vector.broadcast %22 : vector<1x128xf32> to vector<16x128xf32>
      %24 = arith.subf %5, %23 : vector<16x128xf32>
      %c0_12 = arith.constant 0 : index
      %c0_13 = arith.constant 0 : index
      %25 = vector.load %arg6[%c0_12, %c0_13] : memref<1x128xf32, #tpu.memory_space<vmem>>, vector<1x128xf32>
      %cst_14 = arith.constant dense<0.000000e+00> : vector<128xf32>
      %26 = vector.multi_reduction <add>, %24, %cst_14 [0] : vector<16x128xf32> to vector<128xf32>
      %27 = vector.shape_cast %26 : vector<128xf32> to vector<1x128xf32>
      %28 = arith.addf %25, %27 : vector<1x128xf32>
      %c0_15 = arith.constant 0 : index
      %c0_16 = arith.constant 0 : index
      %29 = vector.load %arg6[%c0_15, %c0_16] : memref<1x128xf32, #tpu.memory_space<vmem>>, vector<1x128xf32>
      tpu.vector_store %arg6[%c0_15, %c0_16], %28 {strides = array<i32>} : memref<1x128xf32, #tpu.memory_space<vmem>>, vector<1x128xf32>,
      %c0_17 = arith.constant 0 : index
      %c0_18 = arith.constant 0 : index
      %30 = vector.load %arg7[%c0_17, %c0_18] : memref<1x128xf32, #tpu.memory_space<vmem>>, vector<1x128xf32>
      %31 = arith.mulf %24, %24 : vector<16x128xf32>
      %cst_19 = arith.constant dense<0.000000e+00> : vector<128xf32>
      %32 = vector.multi_reduction <add>, %31, %cst_19 [0] : vector<16x128xf32> to vector<128xf32>
      %33 = vector.shape_cast %32 : vector<128xf32> to vector<1x128xf32>
      %34 = arith.addf %30, %33 : vector<1x128xf32>
      %c0_20 = arith.constant 0 : index
      %c0_21 = arith.constant 0 : index
      %35 = vector.load %arg7[%c0_20, %c0_21] : memref<1x128xf32, #tpu.memory_space<vmem>>, vector<1x128xf32>
      tpu.vector_store %arg7[%c0_20, %c0_21], %34 {strides = array<i32>} : memref<1x128xf32, #tpu.memory_space<vmem>>, vector<1x128xf32>,
    } else {
    }
    %c1_i32 = arith.constant 1 : i32
    %14 = arith.cmpi eq, %arg0, %c1_i32 : i32
    %c0_i32_6 = arith.constant 0 : i32
    %15 = arith.cmpi eq, %arg1, %c0_i32_6 : i32
    %16 = arith.andi %14, %15 : i1
    %17 = arith.extui %16 : i1 to i32
    %c0_i32_7 = arith.constant 0 : i32
    %18 = arith.cmpi ne, %17, %c0_i32_7 : i32
    scf.if %18 {
      %c0_10 = arith.constant 0 : index
      %c0_11 = arith.constant 0 : index
      %22 = vector.load %arg8[%c0_10, %c0_11] : memref<1x128xf32, #tpu.memory_space<vmem>>, vector<1x128xf32>
      %c0_12 = arith.constant 0 : index
      %c0_13 = arith.constant 0 : index
      %23 = vector.load %arg6[%c0_12, %c0_13] : memref<1x128xf32, #tpu.memory_space<vmem>>, vector<1x128xf32>
      %c0_14 = arith.constant 0 : index
      %c0_15 = arith.constant 0 : index
      %24 = vector.load %arg7[%c0_14, %c0_15] : memref<1x128xf32, #tpu.memory_space<vmem>>, vector<1x128xf32>
      %cst_16 = arith.constant 6.250000e-02 : f32
      %25 = vector.broadcast %cst_16 : f32 to vector<1x128xf32>
      %26 = arith.mulf %23, %25 : vector<1x128xf32>
      %cst_17 = arith.constant 6.250000e-02 : f32
      %27 = vector.broadcast %cst_17 : f32 to vector<1x128xf32>
      %28 = arith.mulf %24, %27 : vector<1x128xf32>
      %29 = arith.mulf %26, %26 : vector<1x128xf32>
      %30 = arith.subf %28, %29 : vector<1x128xf32>
      %cst_18 = arith.constant 0.000000e+00 : f32
      %31 = vector.broadcast %cst_18 : f32 to vector<1x128xf32>
      %32 = arith.maximumf %30, %31 : vector<1x128xf32>
      %33 = arith.addf %22, %26 : vector<1x128xf32>
      %c0_19 = arith.constant 0 : index
      %c0_20 = arith.constant 0 : index
      %34 = vector.load %arg4[%c0_19, %c0_20] : memref<4x128xf32, #tpu.memory_space<vmem>>, vector<1x128xf32>
      %cst_21 = arith.constant 9.99999974E-6 : f32
      %35 = vector.broadcast %cst_21 : f32 to vector<1x128xf32>
      %36 = arith.addf %32, %35 : vector<1x128xf32>
      %37 = math.rsqrt %36 : vector<1x128xf32>
      %38 = arith.mulf %34, %37 : vector<1x128xf32>
      %c1 = arith.constant 1 : index
      %c0_22 = arith.constant 0 : index
      %39 = vector.load %arg4[%c1, %c0_22] : memref<4x128xf32, #tpu.memory_space<vmem>>, vector<1x128xf32>
      %40 = arith.mulf %33, %38 : vector<1x128xf32>
      %41 = arith.subf %39, %40 : vector<1x128xf32>
      %c0_23 = arith.constant 0 : index
      %c0_24 = arith.constant 0 : index
      %42 = vector.load %arg6[%c0_23, %c0_24] : memref<1x128xf32, #tpu.memory_space<vmem>>, vector<1x128xf32>
      tpu.vector_store %arg6[%c0_23, %c0_24], %38 {strides = array<i32>} : memref<1x128xf32, #tpu.memory_space<vmem>>, vector<1x128xf32>,
      %c0_25 = arith.constant 0 : index
      %c0_26 = arith.constant 0 : index
      %43 = vector.load %arg7[%c0_25, %c0_26] : memref<1x128xf32, #tpu.memory_space<vmem>>, vector<1x128xf32>
      tpu.vector_store %arg7[%c0_25, %c0_26], %41 {strides = array<i32>} : memref<1x128xf32, #tpu.memory_space<vmem>>, vector<1x128xf32>,
    } else {
    }
    %c1_i32_8 = arith.constant 1 : i32
    %19 = arith.cmpi eq, %arg0, %c1_i32_8 : i32
    %20 = arith.extui %19 : i1 to i32
    %c0_i32_9 = arith.constant 0 : i32
    %21 = arith.cmpi ne, %20, %c0_i32_9 : i32
    scf.if %21 {
      %c0_10 = arith.constant 0 : index
      %c0_11 = arith.constant 0 : index
      %22 = vector.load %arg6[%c0_10, %c0_11] : memref<1x128xf32, #tpu.memory_space<vmem>>, vector<1x128xf32>
      %23 = vector.broadcast %22 : vector<1x128xf32> to vector<16x128xf32>
      %24 = arith.mulf %5, %23 : vector<16x128xf32>
      %c0_12 = arith.constant 0 : index
      %c0_13 = arith.constant 0 : index
      %25 = vector.load %arg7[%c0_12, %c0_13] : memref<1x128xf32, #tpu.memory_space<vmem>>, vector<1x128xf32>
      %26 = vector.broadcast %25 : vector<1x128xf32> to vector<16x128xf32>
      %27 = arith.addf %24, %26 : vector<16x128xf32>
      %cst_14 = arith.constant 0.000000e+00 : f32
      %28 = vector.broadcast %cst_14 : f32 to vector<16x128xf32>
      %29 = arith.maximumf %27, %28 : vector<16x128xf32>
      %c2 = arith.constant 2 : index
      %c0_15 = arith.constant 0 : index
      %30 = vector.load %arg4[%c2, %c0_15] : memref<4x128xf32, #tpu.memory_space<vmem>>, vector<1x128xf32>
      %31 = vector.broadcast %30 : vector<1x128xf32> to vector<16x128xf32>
      %32 = arith.mulf %29, %31 : vector<16x128xf32>
      %cst_16 = arith.constant dense<0.000000e+00> : vector<16xf32>
      %33 = vector.multi_reduction <add>, %32, %cst_16 [1] : vector<16x128xf32> to vector<16xf32>
      %34 = vector.shape_cast %33 : vector<16xf32> to vector<16x1xf32>
      %c3 = arith.constant 3 : index
      %c0_17 = arith.constant 0 : index
      %35 = vector.load %arg4[%c3, %c0_17] : memref<4x128xf32, #tpu.memory_space<vmem>>, vector<1x1xf32>
      %36 = vector.broadcast %35 : vector<1x1xf32> to vector<16x1xf32>
      %37 = arith.addf %34, %36 : vector<16x1xf32>
      %c0_18 = arith.constant 0 : index
      %c0_19 = arith.constant 0 : index
      %38 = vector.load %arg5[%c0_18, %c0_19] : memref<16x1xf32, #tpu.memory_space<vmem>>, vector<16x1xf32>
      tpu.vector_store %arg5[%c0_18, %c0_19], %37 {strides = array<i32>} : memref<16x1xf32, #tpu.memory_space<vmem>>, vector<16x1xf32>,
    } else {
    }
    return
  }
  func.func @transform_0(%arg0: i32, %arg1: i32) -> (i32, i32) {
    %c0_i32 = arith.constant 0 : i32
    %c0_i32_0 = arith.constant 0 : i32
    %c0_i32_1 = arith.constant 0 : i32
    return %c0_i32, %c0_i32_0 : i32, i32
  }
  func.func @transform_1(%arg0: i32, %arg1: i32) -> (i32, i32) {
    %c0_i32 = arith.constant 0 : i32
    %c0_i32_0 = arith.constant 0 : i32
    %c0_i32_1 = arith.constant 0 : i32
    return %c0_i32, %c0_i32_0 : i32, i32
  }
  func.func @transform_2(%arg0: i32, %arg1: i32) -> (i32, i32) {
    %c0_i32 = arith.constant 0 : i32
    %c0_i32_0 = arith.constant 0 : i32
    %c0_i32_1 = arith.constant 0 : i32
    return %c0_i32, %c0_i32_0 : i32, i32
  }
  func.func @transform_3(%arg0: i32, %arg1: i32) -> (i32, i32) {
    %0 = arith.muli %arg0, %arg1 : i32
    %c0_i32 = arith.constant 0 : i32
    %c0_i32_0 = arith.constant 0 : i32
    return %0, %c0_i32 : i32, i32
  }
}

</mosaic_0001>

<llo_original>
// kernel: out_layer_forward.1
$region0: #{out_layer_forward.1}
  #allocation0 [shape = 'u32[]', space=smem, size = 0x4, offset = 0x4, fixed_abs, tag = 'smem constant byte address 0x4 - core index']
  #allocation1 [shape = 'u32[144,128]{1,0:T(1,128)}', space=vmem, size = 0x12000, scoped, tag = 'internal scratch']
  #allocation2 [shape = 'f32[1,128]{1,0:T(1,128)}', space=vmem, size = 0x200, scoped, tag = 'scratch operand']
  #allocation3 [shape = 'f32[1,128]{1,0:T(1,128)}', space=vmem, size = 0x200, scoped, tag = 'scratch operand']
  #allocation4 [shape = 'f32[1,128]{1,0:T(1,128)}', space=vmem, size = 0x200, scoped, tag = 'scratch operand']
  #allocation5 [shape = 'f32[1,128]{1,0:T(1,128)}', space=vmem, size = 0x200, scoped, tag = 'scratch operand']
  %s0 = inlined_call_operand.vmem [shape: bf16[16,32], index: 0, kind: input, shape index: {}]
  %s1 = inlined_call_operand.vmem [shape: bf16[32,128], index: 1, kind: input, shape index: {}]
  %s2 = inlined_call_operand.vmem [shape: f32[4,128], index: 2, kind: input, shape index: {}]
  %s3 = inlined_call_operand.vmem [shape: f32[16,1], index: 3, kind: output, shape index: {}]
  %s4 = sld [smem:[#allocation0]]
  $region61: #{out_layer_forward.1} parent=0
    _
  %s6 = ssub.s32 1, %s4
  %s7 = scalar_select 0, %s6, %s4
  loop: start=0, step=1, limit=4
  $region2: #{out_layer_forward.1} parent=0 // loop_pre_header
    _
  $region3: #{out_layer_forward.1} parent=0 // loop_header
    %s9 = sphi 0, %s13
    %p10 = scmp.ge.s32.totalorder %s9, 4
    %s16 = sphi 0, %s28
    %s17 = sphi 0, %s24
    %s18 = sphi 0, %s16
    %s19 = sphi 0, %s17
    %s20 = sphi 0, %s18
    %s21 = sphi 0, %s19
    %s29 = sphi 0, %s29
    %s31 = sphi 0, %s29
    %s32 = sphi 0, %s31
    %s46 = sphi 0, %s32
    %s50 = sphi 0, %s50
    %s52 = sphi 0, %s50
    %s53 = sphi 0, %s52
    %s67 = sphi 0, %s53
    %s71 = sphi 0, %s71
    %s73 = sphi 0, %s71
    %s74 = sphi 0, %s73
    %s88 = sphi 0, %s74
    %s96 = sphi 0, %s98
    %s99 = sphi 0, %s96
    %s100 = sphi 0, %s99
    %s116 = sphi 0, %s100
  $region4: #{out_layer_forward.1} parent=0 // loop_header_branch
    %12 = sbr.rel (%p10) target = $region8
  $region5: #{out_layer_forward.1} parent=0 // loop_body
    %s14 = ssub.s32 %s9, 1
    %s15 = ssub.s32 %s9, 2
    %s22 = sadd.s32 1, %s17
    %p23 = scmp.ge.s32.totalorder %s22, 1
    %s24 = scalar_select %p23, 0, %s22
    %s25 = sadd.s32 1, %s16
    %s26 = scalar_select %p23, %s25, %s16
    %p27 = scmp.ge.s32.totalorder %s26, 2
    %s28 = scalar_select %p27, 0, %s26
    %s30 = sadd.s32 %s29, 1
    %p33 = scmp.eq.s32.totalorder %s9, 1
    %p34 = scmp.ne.s32.totalorder %s29, %s31
    %p35 = scmp.eq.s32.totalorder %s9, 0
    %p36 = por %p34, %p35
    %p37 = scmp.ne.s32.totalorder %s29, %s31
    %p38 = scmp.eq.s32.totalorder %s14, 1
    %p39 = por %p37, %p38
    %p40 = scmp.ne.s32.totalorder %s31, %s32
    %p41 = scmp.eq.s32.totalorder %s14, 0
    %p42 = por %p40, %p41
    %p43 = scmp.ne.s32.totalorder %s31, %s32
    %p44 = scmp.eq.s32.totalorder %s15, 1
    %p45 = por %p43, %p44
    %p47 = scmp.ne.s32.totalorder %s32, %s46
    %p48 = scmp.eq.s32.totalorder %s15, 0
    %p49 = por %p47, %p48
    %s51 = sadd.s32 %s50, 1
    %p54 = scmp.eq.s32.totalorder %s9, 1
    %p55 = scmp.ne.s32.totalorder %s50, %s52
    %p56 = scmp.eq.s32.totalorder %s9, 0
    %p57 = por %p55, %p56
    %p58 = scmp.ne.s32.totalorder %s50, %s52
    %p59 = scmp.eq.s32.totalorder %s14, 1
    %p60 = por %p58, %p59
    %p61 = scmp.ne.s32.totalorder %s52, %s53
    %p62 = scmp.eq.s32.totalorder %s14, 0
    %p63 = por %p61, %p62
    %p64 = scmp.ne.s32.totalorder %s52, %s53
    %p65 = scmp.eq.s32.totalorder %s15, 1
    %p66 = por %p64, %p65
    %p68 = scmp.ne.s32.totalorder %s53, %s67
    %p69 = scmp.eq.s32.totalorder %s15, 0
    %p70 = por %p68, %p69
    %s72 = sadd.s32 %s71, 1
    %p75 = scmp.eq.s32.totalorder %s9, 1
    %p76 = scmp.ne.s32.totalorder %s71, %s73
    %p77 = scmp.eq.s32.totalorder %s9, 0
    %p78 = por %p76, %p77
    %p79 = scmp.ne.s32.totalorder %s71, %s73
    %p80 = scmp.eq.s32.totalorder %s14, 1
    %p81 = por %p79, %p80
    %p82 = scmp.ne.s32.totalorder %s73, %s74
    %p83 = scmp.eq.s32.totalorder %s14, 0
    %p84 = por %p82, %p83
    %p85 = scmp.ne.s32.totalorder %s73, %s74
    %p86 = scmp.eq.s32.totalorder %s15, 1
    %p87 = por %p85, %p86
    %p89 = scmp.ne.s32.totalorder %s74, %s88
    %p90 = scmp.eq.s32.totalorder %s15, 0
    %p91 = por %p89, %p90
    %s92 = smul.u32 %s16, %s17
    %s93 = smul.u32 %s28, %s24
    %s94 = ssub.s32 %s92, %s93
    %p95 = scmp.eq.s32.totalorder %s94, 0
    %s97 = sadd.s32 %s96, 1
    %s98 = scalar_select %p95, %s96, %s97
    %p101 = pneg %p95
    %p102 = scmp.eq.s32.totalorder %s9, 1
    %p103 = por %p101, %p102
    %p104 = scmp.ne.s32.totalorder %s96, %s99
    %p105 = scmp.eq.s32.totalorder %s9, 0
    %p106 = por %p104, %p105
    %p107 = scmp.ne.s32.totalorder %s96, %s99
    %p108 = scmp.eq.s32.totalorder %s14, 1
    %p109 = por %p107, %p108
    %p110 = scmp.ne.s32.totalorder %s99, %s100
    %p111 = scmp.eq.s32.totalorder %s14, 0
    %p112 = por %p110, %p111
    %p113 = scmp.ne.s32.totalorder %s99, %s100
    %p114 = scmp.eq.s32.totalorder %s15, 1
    %p115 = por %p113, %p114
    %p117 = scmp.ne.s32.totalorder %s100, %s116
    %p118 = scmp.eq.s32.totalorder %s15, 0
    %p119 = por %p117, %p118
    %p120 = scmp.le.s32.totalorder 1, %s9
    %p121 = scmp.lt.s32.totalorder %s9, 3
    %p122 = pnand %p120, %p121
    %p123 = pneg %p122
    // Predicated region
    $region9: #{out_layer_forward.1} parent=5 // pred_check
      _
    $region10: #{out_layer_forward.1} parent=5 // pred_check_branch
      %125 = sbr.rel (%p122) target = $region12
    $region11: #{out_layer_forward.1} parent=5 // pred_region
      %s126 = ssub.s32 %s9, 1
      // Predicated region
      $region13: #{out_layer_forward.1} parent=11 // pred_check
        %p127 = pneg %p42
      $region14: #{out_layer_forward.1} parent=11 // pred_check_branch
        %129 = sbr.rel (%p127) target = $region16
      $region15: #{out_layer_forward.1} parent=11 // pred_region
        _
      $region16: #{out_layer_forward.1} parent=11 // pred_fallthru
        _
      // Predicated region
      $region17: #{out_layer_forward.1} parent=11 // pred_check
        %p130 = pneg %p63
      $region18: #{out_layer_forward.1} parent=11 // pred_check_branch
        %132 = sbr.rel (%p130) target = $region20
      $region19: #{out_layer_forward.1} parent=11 // pred_region
        _
      $region20: #{out_layer_forward.1} parent=11 // pred_fallthru
        _
      // Predicated region
      $region21: #{out_layer_forward.1} parent=11 // pred_check
        %p133 = pneg %p84
      $region22: #{out_layer_forward.1} parent=11 // pred_check_branch
        %135 = sbr.rel (%p133) target = $region24
      $region23: #{out_layer_forward.1} parent=11 // pred_region
        _
      $region24: #{out_layer_forward.1} parent=11 // pred_fallthru
        _
    $region12: #{out_layer_forward.1} parent=5 // pred_fallthru
      _
    %p136 = scmp.lt.s32.totalorder %s9, 2
    // Predicated region
    $region25: #{out_layer_forward.1} parent=5 // pred_check
      %p137 = pneg %p136
    $region26: #{out_layer_forward.1} parent=5 // pred_check_branch
      %139 = sbr.rel (%p137) target = $region28
    $region27: #{out_layer_forward.1} parent=5 // pred_region
      _
    $region28: #{out_layer_forward.1} parent=5 // pred_fallthru
      _
    %p140 = scmp.le.s32.totalorder 1, %s9
    %p141 = scmp.lt.s32.totalorder %s9, 3
    %p142 = pnand %p140, %p141
    %p143 = pneg %p142
    // Predicated region
    $region29: #{out_layer_forward.1} parent=5 // pred_check
      _
    $region30: #{out_layer_forward.1} parent=5 // pred_check_branch
      %145 = sbr.rel (%p142) target = $region32
    $region31: #{out_layer_forward.1} parent=5 // pred_region
      %s146 = ssub.s32 %s9, 1
      %p147 = pneg %p42
      %p148 = pneg %p39
      %p149 = pneg %p63
      %p150 = pneg %p60
      %p151 = pneg %p84
      %p152 = pneg %p81
      %p153 = pneg %p112
      %p154 = pneg %p109
      %s155 = smul.u32 %s18, %s19
      %s156 = smul.u32 2, %s155
      %p157 = scmp.lt.s32.totalorder %s156, 1
      %s158 = scalar_select %p157, %s156, 1
      %s159 = smul.addr %s158, 8
      %s160 = scalar_lea.vmem %s3, %s159
      %s161 = smul.u32 %s18, %s19
      %s162 = smul.u32 2, %s161
      %p163 = scmp.lt.s32.totalorder %s162, 1
      %s164 = scalar_select %p163, %s162, 1
      %s165 = smul.addr %s164, 8
      %s166 = scalar_lea.vmem %s3, %s165
      %s167 = smul.u32 %s18, %s19
      %s168 = smul.u32 2, %s167
      %s170 = smul.u32 %s19, 16
      %s171 = sshra.s32 %s170, 3
      %s172 = sand.u32 %s170, 7
      %s173 = smul.addr %s171, 4
      %s174 = scalar_lea.vmem %s0, %s173
      %v175 = vld [vmem:[%s174] sm:$0xf]
      %v176 = vld [vmem:[%s174 + $0x4] sm:$0xf]
      %v177 = vld [vmem:[%s1] sm:$0xf]
      %v178 = vld [vmem:[%s1 + $0x4] sm:$0xf]
      %v179 = vld [vmem:[%s1 + $0x8] sm:$0xf]
      %v180 = vld [vmem:[%s1 + $0xc] sm:$0xf]
      %v183 = vunpack.c.l.b16 %v175
      %v184 = vunpack.c.l.b16 %v176
      %v185 = vpack.c.b16 %v184, %v183
      %v190 = vunpack.c.l.b16 %v177
      %v191 = vunpack.c.l.b16 %v178
      %v192 = vunpack.c.l.b16 %v179
      %v193 = vunpack.c.l.b16 %v180
      %v194 = vpack.c.b16 %v191, %v190
      %v195 = vpack.c.b16 %v193, %v192
      %vm198 = vcmask 261120
      %v200 = vsel %vm198, %v185, 0
      %202 = vmatprep.subr.bf16.mxu0 0
      %203 = vmatpush1.bf16.msra.mxu0 %v194
      %204 = vmatprep.subr.bf16.mxu0 0
      %205 = vmatpush1.bf16.msra.mxu0 %v195
      %206 = vmatprep.subr.bf16.mxu0 0
      %207 = vmatpush1.bf16.msra.mxu0 0
      %208 = vmatprep.subr.bf16.mxu0 0
      %209 = vmatpush1.bf16.msra.mxu0 0
      %210 = vmatprep.subr.bf16.mxu0 0
      %211 = vmatpush1.bf16.msra.mxu0 0
      %212 = vmatprep.subr.bf16.mxu0 0
      %213 = vmatpush1.bf16.msra.mxu0 0
      %214 = vmatprep.subr.bf16.mxu0 0
      %215 = vmatpush1.bf16.msra.mxu0 0
      %216 = vmatprep.subr.bf16.mxu0 0
      %217 = vmatpush1.bf16.msra.mxu0 0
      %218 = vmatprep.subr.bf16.mxu0 0
      %219 = vmatpush1.bf16.msra.mxu0 0
      %220 = vmatprep.subr.bf16.mxu0 0
      %221 = vmatpush1.bf16.msra.mxu0 0
      %222 = vmatprep.subr.bf16.mxu0 0
      %223 = vmatpush1.bf16.msra.mxu0 0
      %224 = vmatprep.subr.bf16.mxu0 0
      %225 = vmatpush1.bf16.msra.mxu0 0
      %226 = vmatprep.subr.bf16.mxu0 0
      %227 = vmatpush1.bf16.msra.mxu0 0
      %228 = vmatprep.subr.bf16.mxu0 0
      %229 = vmatpush1.bf16.msra.mxu0 0
      %230 = vmatprep.subr.bf16.mxu0 0
      %231 = vmatpush1.bf16.msra.mxu0 0
      %232 = vmatprep.subr.bf16.mxu0 0
      %233 = vmatpush1.bf16.msra.mxu0 0
      %234 = vmatprep.mubr.bf16.mxu0 0
      %235 = vmatmul.mubr.bf16.gmra.mrb[0].mxu0 %v200
      %v236 = vpop.f32.mrb[0].mxu0
      %v237 = vadd.f32 0.0, %v236
      %v238 = vpop.f32.mrb[0].mxu0
      %v239 = vpop.f32.mrb[0].mxu0
      %v240 = vadd.f32 0.0, %v239
      %v241 = vpop.f32.mrb[0].mxu0
      %242 = vdwg.mxu0
      %p243 = scmp.eq.s32.totalorder %s18, 0
      %p244 = scmp.eq.s32.totalorder %s19, 0
      %p245 = pnand %p243, %p244
      %p246 = pneg %p245
      // Predicated region
      $region33: #{out_layer_forward.1} parent=31 // pred_check
        _
      $region34: #{out_layer_forward.1} parent=31 // pred_check_branch
        %248 = sbr.rel (%p245) target = $region36
      $region35: #{out_layer_forward.1} parent=31 // pred_region
        %v249 = vadd.f32 %v237, %v240
        %v250 = vrot.slane %v249, 4
        %v251 = vadd.f32 %v249, %v250
        %v252 = vrot.slane %v251, 2
        %v253 = vadd.f32 %v251, %v252
        %v254 = vrot.slane %v253, 1
        %v255 = vadd.f32 %v253, %v254
        %v256 = vrcp.pop 16.0
        %v257 = vmul.f32 %v255, %v256
        %258 = vst [vmem:[#allocation4] sm:$0x1] %v257
        %259 = vst [vmem:[#allocation2] sm:$0x1] 0.0
        %260 = vst [vmem:[#allocation3] sm:$0x1] 0.0
      $region36: #{out_layer_forward.1} parent=31 // pred_fallthru
        _
      // Predicated region
      $region37: #{out_layer_forward.1} parent=31 // pred_check
        %p261 = pneg %p243
      $region38: #{out_layer_forward.1} parent=31 // pred_check_branch
        %263 = sbr.rel (%p261) target = $region40
      $region39: #{out_layer_forward.1} parent=31 // pred_region
        %v264 = vld [vmem:[#allocation4] sm:$0x1]
        %v266 = vlaneseq
        %v267 = vshrl.u32 %v266, 7
        %v268 = vsub.s32 0, %v267
        %v269 = vrot.slane %v264, %v268
        %v271 = vsub.f32 %v237, %v269
        %v272 = vsub.f32 %v240, %v269
        %v273 = vld [vmem:[#allocation2] sm:$0x1]
        %v274 = vadd.f32 %v271, %v272
        %v275 = vrot.slane %v274, 4
        %v276 = vadd.f32 %v274, %v275
        %v277 = vrot.slane %v276, 2
        %v278 = vadd.f32 %v276, %v277
        %v279 = vrot.slane %v278, 1
        %v280 = vadd.f32 %v278, %v279
        %v281 = vadd.f32 %v273, %v280
        %282 = vst [vmem:[#allocation2] sm:$0x1] %v281
        %v283 = vld [vmem:[#allocation3] sm:$0x1]
        %v284 = vmul.f32 %v271, %v271
        %v285 = vmul.f32 %v272, %v272
        %v286 = vadd.f32 %v284, %v285
        %v287 = vrot.slane %v286, 4
        %v288 = vadd.f32 %v286, %v287
        %v289 = vrot.slane %v288, 2
        %v290 = vadd.f32 %v288, %v289
        %v291 = vrot.slane %v290, 1
        %v292 = vadd.f32 %v290, %v291
        %v293 = vadd.f32 %v283, %v292
        %294 = vst [vmem:[#allocation3] sm:$0x1] %v293
      $region40: #{out_layer_forward.1} parent=31 // pred_fallthru
        _
      %p295 = scmp.eq.s32.totalorder %s18, 1
      %p296 = pnand %p295, %p244
      %p297 = pneg %p296
      // Predicated region
      $region41: #{out_layer_forward.1} parent=31 // pred_check
        _
      $region42: #{out_layer_forward.1} parent=31 // pred_check_branch
        %299 = sbr.rel (%p296) target = $region44
      $region43: #{out_layer_forward.1} parent=31 // pred_region
        %v300 = vld [vmem:[#allocation4] sm:$0x1]
        %v301 = vld [vmem:[#allocation2] sm:$0x1]
        %v302 = vld [vmem:[#allocation3] sm:$0x1]
        %v303 = vmul.f32 %v301, 0.0625
        %v304 = vmul.f32 %v302, 0.0625
        %v305 = vmul.f32 %v303, %v303
        %v306 = vsub.f32 %v304, %v305
        %v307 = vmax.f32 %v306, 0.0
        %v308 = vadd.f32 %v300, %v303
        %v309 = vld [vmem:[%s2] sm:$0x1]
        %v310 = vadd.f32 %v307, 1e-05
        %v311 = vrsqrt.pop %v310
        %v312 = vmul.f32 %v309, %v311
        %v313 = vld [vmem:[%s2 + $0x1] sm:$0x1]
        %v314 = vmul.f32 %v308, %v312
        %v315 = vsub.f32 %v313, %v314
        %316 = vst [vmem:[#allocation2] sm:$0x1] %v312
        %317 = vst [vmem:[#allocation3] sm:$0x1] %v315
      $region44: #{out_layer_forward.1} parent=31 // pred_fallthru
        _
      // Predicated region
      $region45: #{out_layer_forward.1} parent=31 // pred_check
        %p318 = pneg %p295
      $region46: #{out_layer_forward.1} parent=31 // pred_check_branch
        %320 = sbr.rel (%p318) target = $region48
      $region47: #{out_layer_forward.1} parent=31 // pred_region
        %v321 = vld [vmem:[#allocation2] sm:$0x1]
        %v323 = vlaneseq
        %v324 = vshrl.u32 %v323, 7
        %v325 = vsub.s32 0, %v324
        %v326 = vrot.slane %v321, %v325
        %v328 = vmul.f32 %v237, %v326
        %v329 = vmul.f32 %v240, %v326
        %v330 = vld [vmem:[#allocation3] sm:$0x1]
        %v332 = vlaneseq
        %v333 = vshrl.u32 %v332, 7
        %v334 = vsub.s32 0, %v333
        %v335 = vrot.slane %v330, %v334
        %v337 = vadd.f32 %v328, %v335
        %v338 = vadd.f32 %v329, %v335
        %v339 = vmax.f32 %v337, 0.0
        %v340 = vmax.f32 %v338, 0.0
        %v341 = vld [vmem:[%s2 + $0x2] sm:$0x1]
        %v342 = vlaneseq
        %v343 = vshrl.u32 %v342, 7
        %v344 = vsub.s32 0, %v343
        %v345 = vrot.slane %v341, %v344
        %v346 = vmul.f32 %v339, %v345
        %v347 = vmul.f32 %v340, %v345
        %348 = vadd.xlane.f32.xlu0 %v346
        %v349 = vpop.xlane.xlu0 %348
        %350 = vadd.xlane.f32.xlu0 %v347
        %v351 = vpop.xlane.xlu0 %350
        %v352 = vld [vmem:[%s2 + $0x3] sm:$0x1]
        %v353 = vlaneseq
        %v354 = vshrl.u32 %v353, 7
        %v355 = vsub.s32 0, %v354
        %v356 = vrot.slane %v352, %v355
        %v357 = vadd.f32 %v349, %v356
        %v358 = vadd.f32 %v351, %v356
        %vm359 = vcmask 7168
        %360 = vst.msk [vmem:[%s166] sm:$0xff] %vm359, %v357
        %361 = vst.msk [vmem:[%s166 + $0x8] sm:$0xff] %vm359, %v358
      $region48: #{out_layer_forward.1} parent=31 // pred_fallthru
        _
      %s362 = smul.u32 %s18, %s19
      %s363 = smul.u32 2, %s362
      %p364 = scmp.lt.s32.totalorder %s363, 1
      %s365 = scalar_select %p364, %s363, 1
      %s366 = smul.addr %s365, 8
      %s367 = scalar_lea.vmem %s3, %s366
      // Predicated region
      $region49: #{out_layer_forward.1} parent=31 // pred_check
        %p368 = pneg %p109
      $region50: #{out_layer_forward.1} parent=31 // pred_check_branch
        %370 = sbr.rel (%p368) target = $region52
      $region51: #{out_layer_forward.1} parent=31 // pred_region
        %s371 = smul.u32 %s18, %s19
        %s372 = smul.u32 2, %s371
      $region52: #{out_layer_forward.1} parent=31 // pred_fallthru
        _
    $region32: #{out_layer_forward.1} parent=5 // pred_fallthru
      _
    %p373 = scmp.le.s32.totalorder 2, %s9
    // Predicated region
    $region53: #{out_layer_forward.1} parent=5 // pred_check
      %p374 = pneg %p373
    $region54: #{out_layer_forward.1} parent=5 // pred_check_branch
      %376 = sbr.rel (%p374) target = $region56
    $region55: #{out_layer_forward.1} parent=5 // pred_region
      %s377 = ssub.s32 %s9, 2
      // Predicated region
      $region57: #{out_layer_forward.1} parent=55 // pred_check
        %p378 = pneg %p115
      $region58: #{out_layer_forward.1} parent=55 // pred_check_branch
        %380 = sbr.rel (%p378) target = $region60
      $region59: #{out_layer_forward.1} parent=55 // pred_region
        %s381 = smul.u32 %s20, %s21
        %s382 = smul.u32 2, %s381
        %p383 = scmp.lt.s32.totalorder %s382, 1
        %s384 = scalar_select %p383, %s382, 1
        %s385 = smul.addr %s384, 8
        %s386 = scalar_lea.vmem %s3, %s385
      $region60: #{out_layer_forward.1} parent=55 // pred_fallthru
        _
    $region56: #{out_layer_forward.1} parent=5 // pred_fallthru
      _
  $region6: #{out_layer_forward.1} parent=0 // loop_footer
    %s13 = sadd.s32 1, %s9
  $region7: #{out_layer_forward.1} parent=0 // loop_footer_branch
    %8 = sbr.rel target = $region3
  $region8: #{out_layer_forward.1} parent=0 // loop_exit
    _

</llo_original>
